<compile_context>
chip_gen: v5e
topology: v5e:2x2
jax: 0.10.0
libtpu: 0.0.40
codegen_flags: <defaults>
</compile_context>

<pallas_src>
import functools

import jax
import jax.numpy as jnp
from jax.experimental import pallas as pl
from jax.experimental.pallas import tpu as pltpu

EPS = 1e-5  # nn.InstanceNorm2d default eps


def _instance_norm_relu(y, maskf, n_valid):
    """InstanceNorm (affine=False, biased var, eps) + ReLU over the lane axis.

    y: (C, L) f32.  maskf: (1, L) f32 validity mask or None (all lanes valid).
    n_valid: static count of valid lanes.  Single-pass stats (E[y^2] - mean^2) in f32.
    No output masking here: invalid lanes are dropped by the wrapper slice.
    """
    if maskf is None:
        s1 = jnp.sum(y, axis=-1, keepdims=True)
        s2 = jnp.sum(y * y, axis=-1, keepdims=True)
    else:
        s1 = jnp.sum(y * maskf, axis=-1, keepdims=True)
        s2 = jnp.sum((y * y) * maskf, axis=-1, keepdims=True)
    inv_n = 1.0 / float(n_valid)
    mean = s1 * inv_n
    var = s2 * inv_n - mean * mean
    return jnp.maximum((y - mean) * jax.lax.rsqrt(var + EPS), 0.0)


def _fused_conv_in_relu_kernel(x_ref, w_ref, o_ref, *, taps, w_pad, w_out, n_valid):
    """Fused conv (stride=1) + InstanceNorm + ReLU for a block of B samples.

    x_ref: (B, C_in, S_flat)   bf16  zero-padded input, spatially flattened (lane-dense)
    w_ref: (C_out, C_in*K*K)   bf16  weight flattened as (o, (kh, kw, c_in))
    o_ref: (B, C_out, L)       f32   L = H_out * W_pad ("wide" lane-dense layout)
    """
    B, _, L = o_ref.shape

    # Validity mask built in-kernel (no DMA stream); only needed when columns wrap.
    maskf = None
    if w_out != w_pad:
        col = jax.lax.broadcasted_iota(jnp.int32, (1, L), 1)
        maskf = ((col % w_pad) < w_out).astype(jnp.float32)

    w = w_ref[...]  # (C_out, CK) bf16, resident across the static sample loop
    for b in range(B):  # static loop: samples batched per grid step
        xb = x_ref[b]  # (C_in, S_flat) bf16 — sliced directly, no dtype round-trip
        # Stack the K*K statically shifted windows along the contraction axis in VMEM
        # and run ONE MXU matmul with f32 accumulation.
        win = jnp.concatenate([xb[:, d:d + L] for d in taps], axis=0)   # (CK, L) bf16
        y = jnp.dot(w, win, preferred_element_type=jnp.float32)         # (C_out, L) f32
        o_ref[b] = _instance_norm_relu(y, maskf, n_valid).astype(o_ref.dtype)


def _patches_conv_in_relu_kernel(p_ref, w_ref, o_ref):
    """Fallback (stride != 1): pre-built im2col patches, spatial axis on lanes.

    p_ref: (1, CK, P) bf16.  w_ref: (C_out, CK) bf16.  o_ref: (1, C_out, P) f32.
    """
    y = jnp.dot(w_ref[...], p_ref[0], preferred_element_type=jnp.float32)
    o_ref[0] = _instance_norm_relu(y, None, y.shape[-1]).astype(o_ref.dtype)


def _basic_conv2_strided(x, weight, K, stride, padding, dilation, H_out, W_out):
    # Fallback for stride != 1: im2col in the wrapper, laid out (N, CK, P) with the
    # spatial axis minor (no transposes around the pallas_call).
    # TODO(synk): for large images, tile P on a second grid axis (partial sum/sumsq +
    # pl.when finalize) and build the patches in-kernel via strided reads so the untiled
    # (CK, P) block does not blow v7x's smaller VMEM or pay K^2x HBM traffic.
    N, C_in, H, W = x.shape
    C_out = weight.shape[0]
    P = H_out * W_out
    CK = C_in * K * K
    xp = jnp.pad(x.astype(jnp.bfloat16),
                 ((0, 0), (0, 0), (padding, padding), (padding, padding)))
    cols = []
    for kh in range(K):
        for kw in range(K):
            h0, w0 = kh * dilation, kw * dilation
            cols.append(xp[:, :, h0:h0 + (H_out - 1) * stride + 1:stride,
                              w0:w0 + (W_out - 1) * stride + 1:stride])
    patches = jnp.stack(cols, axis=2).reshape(N, CK, P)          # (c_in, tap) order
    w2d = weight.reshape(C_out, CK).astype(jnp.bfloat16)         # matches (c_in, tap)
    out = pl.pallas_call(
        _patches_conv_in_relu_kernel,
        out_shape=jax.ShapeDtypeStruct((N, C_out, P), jnp.float32),
        grid_spec=pltpu.PrefetchScalarGridSpec(
            num_scalar_prefetch=0,
            grid=(N,),
            in_specs=[
                pl.BlockSpec((1, CK, P), lambda n: (n, 0, 0)),
                pl.BlockSpec((C_out, CK), lambda n: (0, 0)),
            ],
            out_specs=pl.BlockSpec((1, C_out, P), lambda n: (n, 0, 0)),
        ),
        compiler_params=pltpu.CompilerParams(
            dimension_semantics=("parallel",),
            vmem_limit_bytes=32 * 1024 * 1024),
    )(patches, w2d)
    return out.reshape(N, C_out, H_out, W_out)


def _pick_samples_per_step(n, bytes_per_sample, vmem_budget=8 << 20):
    """Largest divisor of n keeping >=2 grid steps (2 v7x TCs) and a small VMEM block."""
    if n <= 2:
        return 1
    best = 1
    for b in range(1, n // 2 + 1):
        if n % b == 0 and b * bytes_per_sample <= vmem_budget:
            best = b
    return best


def basic_conv2(x, weight, *, kernel_size, stride=1, padding=0, dilation=1):
    """BasicConv2 forward (groups=1, bias=False, bn=True, relu=True).

    x: (N, C_in, H, W) NCHW float32.  weight: (C_out, C_in, K, K).
    Returns (N, C_out, H_out, W_out) float32.
    """
    N, C_in, H, W = x.shape
    C_out = weight.shape[0]
    K = kernel_size
    H_out = (H + 2 * padding - dilation * (K - 1) - 1) // stride + 1
    W_out = (W + 2 * padding - dilation * (K - 1) - 1) // stride + 1

    if stride != 1:
        return _basic_conv2_strided(x, weight, K, stride, padding, dilation,
                                    H_out, W_out)

    # ---------------- Fused path (stride == 1, any dilation) ----------------
    H_pad, W_pad = H + 2 * padding, W + 2 * padding
    L = H_out * W_pad                 # "wide" lane-dense output length per sample
    tail = (K - 1) * dilation         # flat overrun of the last tap's window
    extra_rows = -(-tail // W_pad) if tail else 0   # fold tail pad into bottom rows
    S_flat = (H_pad + extra_rows) * W_pad
    CK = C_in * K * K

    # Single pad on bf16 data (cast BEFORE padding), then a free reshape.
    xf = jnp.pad(x.astype(jnp.bfloat16),
                 ((0, 0), (0, 0), (padding, padding + extra_rows),
                  (padding, padding))).reshape(N, C_in, S_flat)

    # Weight flattened to (C_out, (kh, kw, c_in)) — matches the in-kernel window stack.
    w2d = jnp.transpose(weight, (0, 2, 3, 1)).reshape(C_out, CK).astype(jnp.bfloat16)

    # Flat offsets of the K*K conv taps in the padded, flattened spatial axis.
    taps = tuple(kh * dilation * W_pad + kw * dilation
                 for kh in range(K) for kw in range(K))

    bytes_per_sample = 2 * (C_in * S_flat * 2 + C_out * L * 4)   # ~double-buffered
    B = _pick_samples_per_step(N, bytes_per_sample)
    # TODO(synk): when N == 1 on v7x, shard spatial tiles of L over a second parallel
    # grid axis (partial sum/sumsq + pl.when finalize) so the second TensorCore works.

    kernel = functools.partial(_fused_conv_in_relu_kernel, taps=taps,
                               w_pad=W_pad, w_out=W_out, n_valid=H_out * W_out)

    out = pl.pallas_call(
        kernel,
        out_shape=jax.ShapeDtypeStruct((N, C_out, L), jnp.float32),
        grid_spec=pltpu.PrefetchScalarGridSpec(
            num_scalar_prefetch=0,
            grid=(N // B,),
            in_specs=[
                pl.BlockSpec((B, C_in, S_flat), lambda g: (g, 0, 0)),
                pl.BlockSpec((C_out, CK), lambda g: (0, 0)),
            ],
            out_specs=pl.BlockSpec((B, C_out, L), lambda g: (g, 0, 0)),
        ),
        compiler_params=pltpu.CompilerParams(
            dimension_semantics=("parallel",)),
    )(xf, w2d)

    # Free reshape + width slice to NCHW (drops the wrapped columns; no transposes).
    return out.reshape(N, C_out, H_out, W_pad)[:, :, :, :W_out]


def _reference(x, weight, *, stride, padding, dilation):
    # Pure-JAX reference: conv -> instance norm (biased var) -> relu.
    y = jax.lax.conv_general_dilated(
        x, weight,
        window_strides=(stride, stride),
        padding=((padding, padding), (padding, padding)),
        rhs_dilation=(dilation, dilation),
        dimension_numbers=("NCHW", "OIHW", "NCHW"),
    )
    mean = jnp.mean(y, axis=(2, 3), keepdims=True)
    var = jnp.mean((y - mean) ** 2, axis=(2, 3), keepdims=True)
    return jnp.maximum((y - mean) * jax.lax.rsqrt(var + EPS), 0.0)


if __name__ == "__main__":
    key = jax.random.PRNGKey(0)
    kx, kw_key = jax.random.split(key)

    # Module config: BasicConv2(in_planes=4, out_planes=8, kernel_size=3,
    #                           stride=1, padding=1, relu=True, bn=True, bias=False)
    N, C_in, H, W = 2, 4, 16, 16
    C_out, K, stride, padding, dilation = 8, 3, 1, 1, 1

    x = jax.random.normal(kx, (N, C_in, H, W), dtype=jnp.float32)
    fan_in = C_in * K * K
    bound = (1.0 / fan_in) ** 0.5
    weight = jax.random.uniform(kw_key, (C_out, C_in, K, K), dtype=jnp.float32,
                                minval=-bound, maxval=bound)

    out = basic_conv2(x, weight, kernel_size=K, stride=stride,
                      padding=padding, dilation=dilation)
    out = jax.block_until_ready(out)
    assert out.shape == (N, C_out, H, W), out.shape

    # The kernel feeds the MXU bf16 operands with f32 accumulation: compare tightly
    # against a reference on bf16-rounded inputs, loosely against the pure-f32 one.
    x_r = x.astype(jnp.bfloat16).astype(jnp.float32)
    w_r = weight.astype(jnp.bfloat16).astype(jnp.float32)
    ref_bf16 = _reference(x_r, w_r, stride=stride, padding=padding, dilation=dilation)
    ref_f32 = _reference(x, weight, stride=stride, padding=padding, dilation=dilation)
    assert jnp.allclose(out, ref_bf16, atol=1e-2, rtol=1e-2), \
        float(jnp.max(jnp.abs(out - ref_bf16)))
    assert jnp.allclose(out, ref_f32, atol=8e-2, rtol=5e-2), \
        float(jnp.max(jnp.abs(out - ref_f32)))

    print("KERNEL_OK")
</pallas_src>

<mosaic_0001>
module attributes {stable_mosaic.version = 11 : i64} {
  func.func @_fused_conv_in_relu_kernel(%arg0: i32, %arg1: memref<1x4x342xbf16, #tpu.memory_space<vmem>>, %arg2: memref<8x36xbf16, #tpu.memory_space<vmem>>, %arg3: memref<1x8x288xf32, #tpu.memory_space<vmem>>) attributes {dimension_semantics = [#tpu.dimension_semantics<parallel>], iteration_bounds = array<i64: 2>, scalar_prefetch = 0 : i64, scratch_operands = 0 : i64, tpu.core_type = #tpu.core_type<tc>, window_params = [{transform_indices = @transform_0, window_bounds = array<i64: 1, 4, 342>}, {pipeline_mode = #tpu.pipeline_mode<synchronous>, transform_indices = @transform_1, window_bounds = array<i64: 8, 36>}, {transform_indices = @transform_2, window_bounds = array<i64: 1, 8, 288>}]} {
    %0 = tpu.iota {dimensions = array<i32: 1>} : vector<1x288xi32>
    %c18_i32 = arith.constant 18 : i32
    %c0_i32 = arith.constant 0 : i32
    %1 = arith.cmpi eq, %c18_i32, %c0_i32 : i32
    %c1_i32 = arith.constant 1 : i32
    %2 = arith.select %1, %c1_i32, %c18_i32 : i32
    %3 = vector.broadcast %2 : i32 to vector<1x288xi32>
    %4 = arith.remsi %0, %3 : vector<1x288xi32>
    %c0_i32_0 = arith.constant 0 : i32
    %5 = vector.broadcast %c0_i32_0 : i32 to vector<1x288xi32>
    %6 = arith.cmpi ne, %4, %5 : vector<1x288xi32>
    %c0_i32_1 = arith.constant 0 : i32
    %7 = vector.broadcast %c0_i32_1 : i32 to vector<1x288xi32>
    %8 = arith.cmpi slt, %4, %7 : vector<1x288xi32>
    %c0_i32_2 = arith.constant 0 : i32
    %9 = arith.cmpi slt, %2, %c0_i32_2 : i32
    %10 = vector.broadcast %9 : i1 to vector<1x288xi1>
    %11 = vector.broadcast %10 : vector<1x288xi1> to vector<1x288xi1>
    %12 = arith.xori %8, %11 : vector<1x288xi1>
    %13 = arith.andi %12, %6 : vector<1x288xi1>
    %14 = vector.broadcast %2 : i32 to vector<1x288xi32>
    %15 = arith.addi %4, %14 : vector<1x288xi32>
    %16 = arith.select %13, %15, %4 : vector<1x288xi1>, vector<1x288xi32>
    %c16_i32 = arith.constant 16 : i32
    %17 = vector.broadcast %c16_i32 : i32 to vector<1x288xi32>
    %18 = arith.cmpi slt, %16, %17 : vector<1x288xi32>
    %19 = arith.extui %18 : vector<1x288xi1> to vector<1x288xi32>
    %20 = arith.sitofp %19 : vector<1x288xi32> to vector<1x288xf32>
    %c0 = arith.constant 0 : index
    %c0_3 = arith.constant 0 : index
    %21 = vector.load %arg2[%c0, %c0_3] : memref<8x36xbf16, #tpu.memory_space<vmem>>, vector<8x36xbf16>
    %c0_4 = arith.constant 0 : index
    %c0_5 = arith.constant 0 : index
    %c0_6 = arith.constant 0 : index
    %22 = vector.load %arg1[%c0_4, %c0_5, %c0_6] : memref<1x4x342xbf16, #tpu.memory_space<vmem>>, vector<1x4x342xbf16>
    %23 = vector.shape_cast %22 : vector<1x4x342xbf16> to vector<4x342xbf16>
    %24 = vector.extract_strided_slice %23 {offsets = [0, 0], sizes = [4, 288], strides = [1, 1]} : vector<4x342xbf16> to vector<4x288xbf16>
    %25 = vector.extract_strided_slice %23 {offsets = [0, 1], sizes = [4, 288], strides = [1, 1]} : vector<4x342xbf16> to vector<4x288xbf16>
    %26 = vector.extract_strided_slice %23 {offsets = [0, 2], sizes = [4, 288], strides = [1, 1]} : vector<4x342xbf16> to vector<4x288xbf16>
    %27 = vector.extract_strided_slice %23 {offsets = [0, 18], sizes = [4, 288], strides = [1, 1]} : vector<4x342xbf16> to vector<4x288xbf16>
    %28 = vector.extract_strided_slice %23 {offsets = [0, 19], sizes = [4, 288], strides = [1, 1]} : vector<4x342xbf16> to vector<4x288xbf16>
    %29 = vector.extract_strided_slice %23 {offsets = [0, 20], sizes = [4, 288], strides = [1, 1]} : vector<4x342xbf16> to vector<4x288xbf16>
    %30 = vector.extract_strided_slice %23 {offsets = [0, 36], sizes = [4, 288], strides = [1, 1]} : vector<4x342xbf16> to vector<4x288xbf16>
    %31 = vector.extract_strided_slice %23 {offsets = [0, 37], sizes = [4, 288], strides = [1, 1]} : vector<4x342xbf16> to vector<4x288xbf16>
    %32 = vector.extract_strided_slice %23 {offsets = [0, 38], sizes = [4, 288], strides = [1, 1]} : vector<4x342xbf16> to vector<4x288xbf16>
    %33 = tpu.concatenate %24, %25, %26, %27, %28, %29, %30, %31, %32 in 0 : vector<4x288xbf16>, vector<4x288xbf16>, vector<4x288xbf16>, vector<4x288xbf16>, vector<4x288xbf16>, vector<4x288xbf16>, vector<4x288xbf16>, vector<4x288xbf16>, vector<4x288xbf16> -> vector<36x288xbf16>
    %cst = arith.constant dense<0.000000e+00> : vector<8x288xf32>
    %34 = tpu.matmul %21, %33, %cst {dimension_numbers = #tpu.dot_dimension_numbers<[1], [0], [0], [1], [0, 0, 1, 1], [], []>} : vector<8x36xbf16>, vector<36x288xbf16>, vector<8x288xf32> -> vector<8x288xf32>
    %35 = vector.broadcast %20 : vector<1x288xf32> to vector<8x288xf32>
    %36 = arith.mulf %34, %35 : vector<8x288xf32>
    %cst_7 = arith.constant dense<0.000000e+00> : vector<8xf32>
    %37 = vector.multi_reduction <add>, %36, %cst_7 [1] : vector<8x288xf32> to vector<8xf32>
    %38 = vector.shape_cast %37 : vector<8xf32> to vector<8x1xf32>
    %39 = arith.mulf %34, %34 : vector<8x288xf32>
    %40 = vector.broadcast %20 : vector<1x288xf32> to vector<8x288xf32>
    %41 = arith.mulf %39, %40 : vector<8x288xf32>
    %cst_8 = arith.constant dense<0.000000e+00> : vector<8xf32>
    %42 = vector.multi_reduction <add>, %41, %cst_8 [1] : vector<8x288xf32> to vector<8xf32>
    %43 = vector.shape_cast %42 : vector<8xf32> to vector<8x1xf32>
    %cst_9 = arith.constant 3.906250e-03 : f32
    %44 = vector.broadcast %cst_9 : f32 to vector<8x1xf32>
    %45 = arith.mulf %38, %44 : vector<8x1xf32>
    %cst_10 = arith.constant 3.906250e-03 : f32
    %46 = vector.broadcast %cst_10 : f32 to vector<8x1xf32>
    %47 = arith.mulf %43, %46 : vector<8x1xf32>
    %48 = arith.mulf %45, %45 : vector<8x1xf32>
    %49 = arith.subf %47, %48 : vector<8x1xf32>
    %50 = vector.broadcast %45 : vector<8x1xf32> to vector<8x288xf32>
    %51 = arith.subf %34, %50 : vector<8x288xf32>
    %cst_11 = arith.constant 9.99999974E-6 : f32
    %52 = vector.broadcast %cst_11 : f32 to vector<8x1xf32>
    %53 = arith.addf %49, %52 : vector<8x1xf32>
    %54 = math.rsqrt %53 : vector<8x1xf32>
    %55 = vector.broadcast %54 : vector<8x1xf32> to vector<8x288xf32>
    %56 = arith.mulf %51, %55 : vector<8x288xf32>
    %cst_12 = arith.constant 0.000000e+00 : f32
    %57 = vector.broadcast %cst_12 : f32 to vector<8x288xf32>
    %58 = arith.maximumf %56, %57 : vector<8x288xf32>
    %c0_13 = arith.constant 0 : index
    %c0_14 = arith.constant 0 : index
    %c0_15 = arith.constant 0 : index
    %59 = vector.load %arg3[%c0_13, %c0_14, %c0_15] : memref<1x8x288xf32, #tpu.memory_space<vmem>>, vector<1x8x288xf32>
    %60 = vector.shape_cast %59 : vector<1x8x288xf32> to vector<8x288xf32>
    %61 = vector.shape_cast %58 : vector<8x288xf32> to vector<1x8x288xf32>
    tpu.vector_store %arg3[%c0_13, %c0_14, %c0_15], %61 {strides = array<i32>} : memref<1x8x288xf32, #tpu.memory_space<vmem>>, vector<1x8x288xf32>,
    return
  }
  func.func @transform_0(%arg0: i32) -> (i32, i32, i32) {
    %c0_i32 = arith.constant 0 : i32
    %c0_i32_0 = arith.constant 0 : i32
    %c0_i32_1 = arith.constant 0 : i32
    return %arg0, %c0_i32, %c0_i32_0 : i32, i32, i32
  }
  func.func @transform_1(%arg0: i32) -> (i32, i32) {
    %c0_i32 = arith.constant 0 : i32
    %c0_i32_0 = arith.constant 0 : i32
    %c0_i32_1 = arith.constant 0 : i32
    return %c0_i32, %c0_i32_0 : i32, i32
  }
  func.func @transform_2(%arg0: i32) -> (i32, i32, i32) {
    %c0_i32 = arith.constant 0 : i32
    %c0_i32_0 = arith.constant 0 : i32
    %c0_i32_1 = arith.constant 0 : i32
    return %arg0, %c0_i32, %c0_i32_0 : i32, i32, i32
  }
}

</mosaic_0001>

<llo_original>
// kernel: tpu_custom_call.1
$region0: #{tpu_custom_call.1}
  #allocation0 [shape = 'u32[]', space=smem, size = 0x4, offset = 0x4, fixed_abs, tag = 'smem constant byte address 0x4 - core index']
  #allocation1 [shape = 'u32[72,128]{1,0:T(1,128)}', space=vmem, size = 0x9000, scoped, tag = 'internal scratch']
  %s0 = inlined_call_operand.hbm [shape: bf16[2,4,342], index: 0, kind: input, shape index: {}]
  %s1 = inlined_call_operand.hbm [shape: bf16[8,36], index: 1, kind: input, shape index: {}]
  %s2 = inlined_call_operand.hbm [shape: f32[2,8,288], index: 2, kind: output, shape index: {}]
  %s3 = sld [smem:[#allocation0]]
  $region49: #{tpu_custom_call.1} parent=0
    _
  %s5 = ssub.s32 1, %s3
  %s6 = scalar_select 0, %s5, %s3
  $region1: #{tpu_custom_call.1} parent=0
    #allocation2 [shape = 'u8[6144]{0}', space=vmem, size = 0x1800, scoped, tag = 'input window, operand 0']
    #allocation3 [shape = 's32[2]{0}', space=sflag, size = 0x8, scoped, tag = 'scoped memory for tpu_custom_call.1']
    #allocation4 [shape = 's32[2]{0}', space=sflag, size = 0x8, scoped, tag = 'scoped memory for tpu_custom_call.1']
    #allocation5 [shape = 'u8[2048]{0}', space=vmem, size = 0x800, scoped, tag = 'input window, operand 1, single buffered']
    #allocation6 [shape = 's32[1]{0}', space=sflag, size = 0x4, scoped, tag = 'scoped memory for tpu_custom_call.1']
    #allocation7 [shape = 'u8[24576]{0}', space=vmem, size = 0x6000, scoped, tag = 'output window, operand 0']
    %7 = vsyncpa [#allocation3], 0
    %s8 = scalar_lea.sflag [#allocation3], 1
    %9 = vsyncpa %s8, 0
    %10 = vsyncpa [#allocation6], 0
    %11 = vsyncpa [#allocation4], 0
    %s12 = scalar_lea.sflag [#allocation4], 1
    %13 = vsyncpa %s12, 0
    loop: start=0, step=1, limit=4
    $region2: #{tpu_custom_call.1} parent=1 // loop_pre_header
      _
    $region3: #{tpu_custom_call.1} parent=1 // loop_header
      %s15 = sphi 0, %s19
      %p16 = scmp.ge.s32.totalorder %s15, 4
      %s25 = sphi 0, %s27
      %s28 = sphi 0, %s25
      %s29 = sphi 0, %s28
      %s45 = sphi 0, %s29
      %s49 = sphi 0, %s49
      %s51 = sphi 0, %s49
      %s52 = sphi 0, %s51
      %s66 = sphi 0, %s52
      %s72 = sphi 0, %s74
      %s75 = sphi 0, %s72
      %s76 = sphi 0, %s75
      %s92 = sphi 0, %s76
    $region4: #{tpu_custom_call.1} parent=1 // loop_header_branch
      %18 = sbr.rel (%p16) target = $region8
    $region5: #{tpu_custom_call.1} parent=1 // loop_body
      %s20 = ssub.s32 %s15, 1
      %s21 = ssub.s32 %s15, 2
      %s22 = sadd.s32 %s15, 1
      %s23 = ssub.s32 %s15, %s22
      %p24 = scmp.eq.s32.totalorder %s23, 0
      %s26 = sadd.s32 %s25, 1
      %s27 = scalar_select %p24, %s25, %s26
      %p30 = pneg %p24
      %p31 = scmp.eq.s32.totalorder %s15, 1
      %p32 = por %p30, %p31
      %p33 = scmp.ne.s32.totalorder %s25, %s28
      %p34 = scmp.eq.s32.totalorder %s15, 0
      %p35 = por %p33, %p34
      %p36 = scmp.ne.s32.totalorder %s25, %s28
      %p37 = scmp.eq.s32.totalorder %s20, 1
      %p38 = por %p36, %p37
      %p39 = scmp.ne.s32.totalorder %s28, %s29
      %p40 = scmp.eq.s32.totalorder %s20, 0
      %p41 = por %p39, %p40
      %p42 = scmp.ne.s32.totalorder %s28, %s29
      %p43 = scmp.eq.s32.totalorder %s21, 1
      %p44 = por %p42, %p43
      %p46 = scmp.ne.s32.totalorder %s29, %s45
      %p47 = scmp.eq.s32.totalorder %s21, 0
      %p48 = por %p46, %p47
      %s50 = sadd.s32 %s49, 1
      %p53 = scmp.eq.s32.totalorder %s15, 1
      %p54 = scmp.ne.s32.totalorder %s49, %s51
      %p55 = scmp.eq.s32.totalorder %s15, 0
      %p56 = por %p54, %p55
      %p57 = scmp.ne.s32.totalorder %s49, %s51
      %p58 = scmp.eq.s32.totalorder %s20, 1
      %p59 = por %p57, %p58
      %p60 = scmp.ne.s32.totalorder %s51, %s52
      %p61 = scmp.eq.s32.totalorder %s20, 0
      %p62 = por %p60, %p61
      %p63 = scmp.ne.s32.totalorder %s51, %s52
      %p64 = scmp.eq.s32.totalorder %s21, 1
      %p65 = por %p63, %p64
      %p67 = scmp.ne.s32.totalorder %s52, %s66
      %p68 = scmp.eq.s32.totalorder %s21, 0
      %p69 = por %p67, %p68
      %s70 = ssub.s32 %s15, %s22
      %p71 = scmp.eq.s32.totalorder %s70, 0
      %s73 = sadd.s32 %s72, 1
      %s74 = scalar_select %p71, %s72, %s73
      %p77 = pneg %p71
      %p78 = scmp.eq.s32.totalorder %s15, 1
      %p79 = por %p77, %p78
      %p80 = scmp.ne.s32.totalorder %s72, %s75
      %p81 = scmp.eq.s32.totalorder %s15, 0
      %p82 = por %p80, %p81
      %p83 = scmp.ne.s32.totalorder %s72, %s75
      %p84 = scmp.eq.s32.totalorder %s20, 1
      %p85 = por %p83, %p84
      %p86 = scmp.ne.s32.totalorder %s75, %s76
      %p87 = scmp.eq.s32.totalorder %s20, 0
      %p88 = por %p86, %p87
      %p89 = scmp.ne.s32.totalorder %s75, %s76
      %p90 = scmp.eq.s32.totalorder %s21, 1
      %p91 = por %p89, %p90
      %p93 = scmp.ne.s32.totalorder %s76, %s92
      %p94 = scmp.eq.s32.totalorder %s21, 0
      %p95 = por %p93, %p94
      %p96 = scmp.le.s32.totalorder 1, %s15
      %p97 = scmp.lt.s32.totalorder %s15, 3
      %p98 = pnand %p96, %p97
      %p99 = pneg %p98
      // Predicated region
      $region9: #{tpu_custom_call.1} parent=5 // pred_check
        _
      $region10: #{tpu_custom_call.1} parent=5 // pred_check_branch
        %101 = sbr.rel (%p98) target = $region12
      $region11: #{tpu_custom_call.1} parent=5 // pred_region
        %s102 = ssub.s32 %s15, 1
        // Predicated region
        $region13: #{tpu_custom_call.1} parent=11 // pred_check
          %p103 = pneg %p62
        $region14: #{tpu_custom_call.1} parent=11 // pred_check_branch
          %105 = sbr.rel (%p103) target = $region16
        $region15: #{tpu_custom_call.1} parent=11 // pred_region
          %107 = vsyncadd [#allocation6], 0
          %s109 = sshll.u32 %s1, 4
          %s110 = int_to_ptr.hbm [resolvable:$true] %s109
          %s111 = sshll.u32 [#allocation5], 4
          %s112 = int_to_ptr.vmem [resolvable:$true] %s111
          %114 = dma.hbm_to_vmem [thread:$0]  %s110, 64, %s112, [#allocation6]
        $region16: #{tpu_custom_call.1} parent=11 // pred_fallthru
          _
      $region12: #{tpu_custom_call.1} parent=5 // pred_fallthru
        _
      %p115 = scmp.lt.s32.totalorder %s15, 2
      // Predicated region
      $region17: #{tpu_custom_call.1} parent=5 // pred_check
        %p116 = pneg %p115
      $region18: #{tpu_custom_call.1} parent=5 // pred_check_branch
        %118 = sbr.rel (%p116) target = $region20
      $region19: #{tpu_custom_call.1} parent=5 // pred_region
        // Predicated region
        $region21: #{tpu_custom_call.1} parent=19 // pred_check
          %p119 = pneg %p35
        $region22: #{tpu_custom_call.1} parent=19 // pred_check_branch
          %121 = sbr.rel (%p119) target = $region24
        $region23: #{tpu_custom_call.1} parent=19 // pred_region
          %s122 = sand.u32 %s25, 1
          %s123 = scalar_lea.sflag [#allocation3], %s122
          %s124 = sand.u32 %s25, 1
          %s125 = smul.addr %s124, 6
          %s126 = scalar_lea.vmem [#allocation2], %s125
          %128 = vsyncadd %s123, 0
          %s129 = smul.addr %s15, 3
          %s130 = smul.addr %s129, 2
          %s131 = scalar_lea.hbm %s0, %s130
          %s133 = sshll.u32 %s131, 4
          %s134 = int_to_ptr.hbm [resolvable:$true] %s133
          %s135 = sshll.u32 %s126, 4
          %s136 = int_to_ptr.vmem [resolvable:$true] %s135
          %138 = dma.hbm_to_vmem [thread:$0]  %s134, 96, %s136, %s123
        $region24: #{tpu_custom_call.1} parent=19 // pred_fallthru
          _
      $region20: #{tpu_custom_call.1} parent=5 // pred_fallthru
        _
      %p139 = scmp.le.s32.totalorder 1, %s15
      %p140 = scmp.lt.s32.totalorder %s15, 3
      %p141 = pnand %p139, %p140
      %p142 = pneg %p141
      // Predicated region
      $region25: #{tpu_custom_call.1} parent=5 // pred_check
        _
      $region26: #{tpu_custom_call.1} parent=5 // pred_check_branch
        %144 = sbr.rel (%p141) target = $region28
      $region27: #{tpu_custom_call.1} parent=5 // pred_region
        %s145 = ssub.s32 %s15, 1
        %s146 = sand.u32 %s28, 1
        %s147 = scalar_lea.sflag [#allocation3], %s146
        %s148 = sand.u32 %s28, 1
        %s149 = smul.addr %s148, 6
        %s150 = scalar_lea.vmem [#allocation2], %s149
        // Predicated region
        $region29: #{tpu_custom_call.1} parent=27 // pred_check
          %p151 = pneg %p41
        $region30: #{tpu_custom_call.1} parent=27 // pred_check_branch
          %153 = sbr.rel (%p151) target = $region32
        $region31: #{tpu_custom_call.1} parent=27 // pred_region
          %155 = dma.done %s147, 96
        $region32: #{tpu_custom_call.1} parent=27 // pred_fallthru
          _
        // Predicated region
        $region33: #{tpu_custom_call.1} parent=27 // pred_check
          %p156 = pneg %p62
        $region34: #{tpu_custom_call.1} parent=27 // pred_check_branch
          %158 = sbr.rel (%p156) target = $region36
        $region35: #{tpu_custom_call.1} parent=27 // pred_region
          %160 = dma.done [#allocation6], 64
        $region36: #{tpu_custom_call.1} parent=27 // pred_fallthru
          _
        %s161 = sand.u32 %s28, 1
        %s162 = scalar_lea.sflag [#allocation3], %s161
        %s163 = sand.u32 %s28, 1
        %s164 = smul.addr %s163, 6
        %s165 = scalar_lea.vmem [#allocation2], %s164
        %p166 = pneg %p41
        %p167 = pneg %p38
        %p168 = pneg %p62
        %p169 = pneg %p59
        %p170 = pneg %p88
        %p171 = pneg %p85
        %s172 = sand.u32 %s75, 1
        %s173 = scalar_lea.sflag [#allocation4], %s172
        %s174 = sand.u32 %s75, 1
        %s175 = smul.addr %s174, 24
        %s176 = scalar_lea.vmem [#allocation7], %s175
        %v178 = vlaneseq
        %v179 = vand.u32 %v178, 127
        %v180 = vadd.s32 %v179, 128
        %v181 = vadd.s32 %v179, 256
        %vm182 = vcmp.lt.s32.totalorder %v179, 0
        %v183 = vsub.s32 0, %v179
        %v184 = vsel %vm182, %v183, %v179
        %v185 = vand.u32 %v184, 65535
        %v186 = vshrl.u32 %v184, 16
        %v188 = vmul.u32 %v185, 14564
        %v189 = vmul.u32 %v185, 58254
        %v190 = vmul.u32 %v186, 14564
        %v191 = vmul.u32 %v186, 58254
        %v192 = vshll.u32 %v189, 16
        %v193 = vshrl.u32 %v189, 16
        %v194 = vshll.u32 %v190, 16
        %v195 = vshrl.u32 %v190, 16
        %vm196 = vc.u32 %v188, %v192
        %v197 = vsel %vm196, 1, 0
        %v198 = vadd.s32 %v188, %v192
        %v199 = vadd.s32 %v191, %v197
        %vm200 = vc.u32 %v198, %v194
        %v201 = vsel %vm200, 1, 0
        %v202 = vadd.s32 %v198, %v194
        %v203 = vadd.s32 %v199, %v201
        %v204 = vadd.s32 %v203, %v193
        %v205 = vadd.s32 %v204, %v195
        %v206 = vshrl.u32 %v205, 4
        %v207 = vmul.u32 %v206, 18
        %v208 = vsub.s32 %v184, %v207
        %v209 = vsub.s32 0, %v208
        %v210 = vsel %vm182, %v209, %v208
        %vm211 = vcmp.lt.s32.totalorder %v180, 0
        %v212 = vsub.s32 0, %v180
        %v213 = vsel %vm211, %v212, %v180
        %v214 = vand.u32 %v213, 65535
        %v215 = vshrl.u32 %v213, 16
        %v217 = vmul.u32 %v214, 14564
        %v218 = vmul.u32 %v214, 58254
        %v219 = vmul.u32 %v215, 14564
        %v220 = vmul.u32 %v215, 58254
        %v221 = vshll.u32 %v218, 16
        %v222 = vshrl.u32 %v218, 16
        %v223 = vshll.u32 %v219, 16
        %v224 = vshrl.u32 %v219, 16
        %vm225 = vc.u32 %v217, %v221
        %v226 = vsel %vm225, 1, 0
        %v227 = vadd.s32 %v217, %v221
        %v228 = vadd.s32 %v220, %v226
        %vm229 = vc.u32 %v227, %v223
        %v230 = vsel %vm229, 1, 0
        %v231 = vadd.s32 %v227, %v223
        %v232 = vadd.s32 %v228, %v230
        %v233 = vadd.s32 %v232, %v222
        %v234 = vadd.s32 %v233, %v224
        %v235 = vshrl.u32 %v234, 4
        %v236 = vmul.u32 %v235, 18
        %v237 = vsub.s32 %v213, %v236
        %v238 = vsub.s32 0, %v237
        %v239 = vsel %vm211, %v238, %v237
        %vm240 = vcmp.lt.s32.totalorder %v181, 0
        %v241 = vsub.s32 0, %v181
        %v242 = vsel %vm240, %v241, %v181
        %v243 = vand.u32 %v242, 65535
        %v244 = vshrl.u32 %v242, 16
        %v246 = vmul.u32 %v243, 14564
        %v247 = vmul.u32 %v243, 58254
        %v248 = vmul.u32 %v244, 14564
        %v249 = vmul.u32 %v244, 58254
        %v250 = vshll.u32 %v247, 16
        %v251 = vshrl.u32 %v247, 16
        %v252 = vshll.u32 %v248, 16
        %v253 = vshrl.u32 %v248, 16
        %vm254 = vc.u32 %v246, %v250
        %v255 = vsel %vm254, 1, 0
        %v256 = vadd.s32 %v246, %v250
        %v257 = vadd.s32 %v249, %v255
        %vm258 = vc.u32 %v256, %v252
        %v259 = vsel %vm258, 1, 0
        %v260 = vadd.s32 %v256, %v252
        %v261 = vadd.s32 %v257, %v259
        %v262 = vadd.s32 %v261, %v251
        %v263 = vadd.s32 %v262, %v253
        %v264 = vshrl.u32 %v263, 4
        %v265 = vmul.u32 %v264, 18
        %v266 = vsub.s32 %v242, %v265
        %v267 = vsub.s32 0, %v266
        %v268 = vsel %vm240, %v267, %v266
        %vm269 = vcmp.ne.s32.totalorder %v210, 0
        %vm270 = vcmp.ne.s32.totalorder %v239, 0
        %vm271 = vcmp.ne.s32.totalorder %v268, 0
        %vm272 = vcmp.lt.s32.totalorder %v210, 0
        %vm273 = vcmp.lt.s32.totalorder %v239, 0
        %vm274 = vcmp.lt.s32.totalorder %v268, 0
        %vm275 = vmand %vm272, %vm269
        %vm276 = vmand %vm273, %vm270
        %vm277 = vmand %vm274, %vm271
        %v278 = vadd.s32 %v210, 18
        %v279 = vadd.s32 %v239, 18
        %v280 = vadd.s32 %v268, 18
        %v281 = vsel %vm275, %v278, %v210
        %v282 = vsel %vm276, %v279, %v239
        %v283 = vsel %vm277, %v280, %v268
        %vm284 = vcmp.lt.s32.totalorder %v281, 16
        %vm285 = vcmp.lt.s32.totalorder %v282, 16
        %vm286 = vcmp.lt.s32.totalorder %v283, 16
        %v287 = vsel %vm284, 1, 0
        %v288 = vsel %vm285, 1, 0
        %v289 = vsel %vm286, 1, 0
        %v290 = vcvt.s32.f32 %v287
        %v291 = vcvt.s32.f32 %v288
        %v292 = vcvt.s32.f32 %v289
        %v293 = vld [vmem:[#allocation5] sm:$0xf]
        %v294 = vld [vmem:[%s150] sm:$0x3f]
        %296 = vst [vmem:[#allocation1] ss:$4 sm:$0xff] %v294
        %v297 = vld.sshfl [vmem:[#allocation1] sm:$0xff pattern:$0x73625140]
        %v298 = vld.sshfl [vmem:[#allocation1 + $0x8] sm:$0xff pattern:$0x73625140]
        %v299 = vld.sshfl [vmem:[#allocation1 + $0x10] sm:$0xff pattern:$0x73625140]
        %s300 = scalar_lea.vmem [#allocation1], 1
        %301 = vst [vmem:[%s300] ss:$4 sm:$0xff] %v294
        %v302 = vld.sshfl [vmem:[#allocation1] sm:$0xff pattern:$0x73625140]
        %v304 = vld.sshfl [vmem:[#allocation1 + $0x8] sm:$0xff pattern:$0x73625140]
        %v306 = vld.sshfl [vmem:[#allocation1 + $0x10] sm:$0xff pattern:$0x73625140]
        %308 = vrot.lane.b32.xlu0 %v302, 127
        %v309 = vpop.permute.xlu0 %308
        %310 = vrot.lane.b32.xlu0 %v304, 127
        %v311 = vpop.permute.xlu0 %310
        %312 = vrot.lane.b32.xlu0 %v306, 127
        %v313 = vpop.permute.xlu0 %312
        %vm314 = vcmask 1039360
        %v315 = vsel %vm314, %v309, %v311
        %v316 = vsel %vm314, %v311, %v313
        %s317 = scalar_lea.vmem [#allocation1], 2
        %318 = vst [vmem:[%s317] ss:$4 sm:$0xff] %v294
        %v319 = vld.sshfl [vmem:[#allocation1] sm:$0xff pattern:$0x73625140]
        %v321 = vld.sshfl [vmem:[#allocation1 + $0x8] sm:$0xff pattern:$0x73625140]
        %v323 = vld.sshfl [vmem:[#allocation1 + $0x10] sm:$0xff pattern:$0x73625140]
        %325 = vrot.lane.b32.xlu0 %v319, 126
        %v326 = vpop.permute.xlu0 %325
        %327 = vrot.lane.b32.xlu0 %v321, 126
        %v328 = vpop.permute.xlu0 %327
        %329 = vrot.lane.b32.xlu0 %v323, 126
        %v330 = vpop.permute.xlu0 %329
        %vm331 = vcmask 1031168
        %v332 = vsel %vm331, %v326, %v328
        %v333 = vsel %vm331, %v328, %v330
        %s334 = scalar_lea.vmem [#allocation1], 3
        %335 = vst [vmem:[%s334] ss:$4 sm:$0xff] %v294
        %v336 = vld.sshfl [vmem:[#allocation1] sm:$0xff pattern:$0x73625140]
        %v338 = vld.sshfl [vmem:[#allocation1 + $0x8] sm:$0xff pattern:$0x73625140]
        %v340 = vld.sshfl [vmem:[#allocation1 + $0x10] sm:$0xff pattern:$0x73625140]
        %342 = vrot.lane.b32.xlu0 %v336, 110
        %v343 = vpop.permute.xlu0 %342
        %344 = vrot.lane.b32.xlu0 %v338, 110
        %v345 = vpop.permute.xlu0 %344
        %346 = vrot.lane.b32.xlu0 %v340, 110
        %v347 = vpop.permute.xlu0 %346
        %vm348 = vcmask 900096
        %v349 = vsel %vm348, %v343, %v345
        %v350 = vsel %vm348, %v345, %v347
        %351 = vst [vmem:[#allocation1] ss:$4 sm:$0xff] %v294
        %v352 = vld.sshfl [vmem:[#allocation1] sm:$0xff pattern:$0x73625140]
        %v354 = vld.sshfl [vmem:[#allocation1 + $0x8] sm:$0xff pattern:$0x73625140]
        %v356 = vld.sshfl [vmem:[#allocation1 + $0x10] sm:$0xff pattern:$0x73625140]
        %358 = vrot.lane.b32.xlu0 %v352, 109
        %v359 = vpop.permute.xlu0 %358
        %360 = vrot.lane.b32.xlu0 %v354, 109
        %v361 = vpop.permute.xlu0 %360
        %362 = vrot.lane.b32.xlu0 %v356, 109
        %v363 = vpop.permute.xlu0 %362
        %vm364 = vcmask 891904
        %v365 = vsel %vm364, %v359, %v361
        %v366 = vsel %vm364, %v361, %v363
        %s367 = scalar_lea.vmem [#allocation1], 1
        %368 = vst [vmem:[%s367] ss:$4 sm:$0xff] %v294
        %v369 = vld.sshfl [vmem:[#allocation1] sm:$0xff pattern:$0x73625140]
        %v371 = vld.sshfl [vmem:[#allocation1 + $0x8] sm:$0xff pattern:$0x73625140]
        %v373 = vld.sshfl [vmem:[#allocation1 + $0x10] sm:$0xff pattern:$0x73625140]
        %375 = vrot.lane.b32.xlu0 %v369, 108
        %v376 = vpop.permute.xlu0 %375
        %377 = vrot.lane.b32.xlu0 %v371, 108
        %v378 = vpop.permute.xlu0 %377
        %379 = vrot.lane.b32.xlu0 %v373, 108
        %v380 = vpop.permute.xlu0 %379
        %vm381 = vcmask 883712
        %v382 = vsel %vm381, %v376, %v378
        %v383 = vsel %vm381, %v378, %v380
        %s384 = scalar_lea.vmem [#allocation1], 2
        %385 = vst [vmem:[%s384] ss:$4 sm:$0xff] %v294
        %v386 = vld.sshfl [vmem:[#allocation1] sm:$0xff pattern:$0x73625140]
        %v388 = vld.sshfl [vmem:[#allocation1 + $0x8] sm:$0xff pattern:$0x73625140]
        %v390 = vld.sshfl [vmem:[#allocation1 + $0x10] sm:$0xff pattern:$0x73625140]
        %392 = vrot.lane.b32.xlu0 %v386, 92
        %v393 = vpop.permute.xlu0 %392
        %394 = vrot.lane.b32.xlu0 %v388, 92
        %v395 = vpop.permute.xlu0 %394
        %396 = vrot.lane.b32.xlu0 %v390, 92
        %v397 = vpop.permute.xlu0 %396
        %vm398 = vcmask 752640
        %v399 = vsel %vm398, %v393, %v395
        %v400 = vsel %vm398, %v395, %v397
        %s401 = scalar_lea.vmem [#allocation1], 3
        %402 = vst [vmem:[%s401] ss:$4 sm:$0xff] %v294
        %v403 = vld.sshfl [vmem:[#allocation1] sm:$0xff pattern:$0x73625140]
        %v405 = vld.sshfl [vmem:[#allocation1 + $0x8] sm:$0xff pattern:$0x73625140]
        %v407 = vld.sshfl [vmem:[#allocation1 + $0x10] sm:$0xff pattern:$0x73625140]
        %409 = vrot.lane.b32.xlu0 %v403, 91
        %v410 = vpop.permute.xlu0 %409
        %411 = vrot.lane.b32.xlu0 %v405, 91
        %v412 = vpop.permute.xlu0 %411
        %413 = vrot.lane.b32.xlu0 %v407, 91
        %v414 = vpop.permute.xlu0 %413
        %vm415 = vcmask 744448
        %v416 = vsel %vm415, %v410, %v412
        %v417 = vsel %vm415, %v412, %v414
        %418 = vst [vmem:[#allocation1] ss:$4 sm:$0xff] %v294
        %v419 = vld.sshfl [vmem:[#allocation1] sm:$0xff pattern:$0x73625140]
        %v421 = vld.sshfl [vmem:[#allocation1 + $0x8] sm:$0xff pattern:$0x73625140]
        %v423 = vld.sshfl [vmem:[#allocation1 + $0x10] sm:$0xff pattern:$0x73625140]
        %425 = vrot.lane.b32.xlu0 %v419, 90
        %v426 = vpop.permute.xlu0 %425
        %427 = vrot.lane.b32.xlu0 %v421, 90
        %v428 = vpop.permute.xlu0 %427
        %429 = vrot.lane.b32.xlu0 %v423, 90
        %v430 = vpop.permute.xlu0 %429
        %vm431 = vcmask 736256
        %v432 = vsel %vm431, %v426, %v428
        %v433 = vsel %vm431, %v428, %v430
        %vm434 = vcmask 1041408
        %v436 = vsel %vm434, %v297, %v315
        %v438 = vsel %vm434, %v298, %v316
        %v440 = vsel %vm434, %v299, %v313
        %vm441 = vcmask 1043456
        %v443 = vsel %vm441, %v436, %v332
        %v445 = vsel %vm441, %v438, %v333
        %v447 = vsel %vm441, %v440, %v330
        %vm448 = vcmask 1045504
        %v450 = vsel %vm448, %v443, %v349
        %v453 = vsel %vm448, %v445, %v350
        %v456 = vsel %vm448, %v447, %v347
        %v460 = vsel %vm434, %v365, %v382
        %v463 = vsel %vm434, %v366, %v383
        %v466 = vsel %vm434, %v363, %v380
        %v468 = vsel %vm441, %v460, %v399
        %v470 = vsel %vm441, %v463, %v400
        %v472 = vsel %vm441, %v466, %v397
        %v474 = vsel %vm448, %v468, %v416
        %v477 = vsel %vm448, %v470, %v417
        %v480 = vsel %vm448, %v472, %v414
        %vm482 = vcmask 293888
        %v484 = vsel %vm482, %v293, 0
        %v487 = vsel %vm434, %v432, 0
        %v490 = vsel %vm434, %v433, 0
        %v493 = vsel %vm434, %v430, 0
        %495 = vmatpush.bf16.msra.mxu0 0
        %496 = vmatpush.bf16.msra.mxu0 0
        %497 = vmatpush.bf16.msra.mxu0 0
        %498 = vmatpush.bf16.msra.mxu0 0
        %499 = vmatpush.bf16.msra.mxu0 0
        %500 = vmatpush.bf16.msra.mxu0 %v487
        %501 = vmatpush.bf16.msra.mxu0 %v474
        %502 = vmatpush.bf16.msra.mxu0 %v450
        %503 = vmatmul.bf16.gmra.mxu0 %v484
        %v504 = vpop.f32.mrf.mxu0
        %v505 = vadd.f32 0.0, %v504
        %v506 = vpop.f32.mrf.mxu0
        %507 = vdwg.mxu0
        %508 = vmatpush.bf16.msra.mxu0 0
        %509 = vmatpush.bf16.msra.mxu0 0
        %510 = vmatpush.bf16.msra.mxu0 0
        %511 = vmatpush.bf16.msra.mxu0 0
        %512 = vmatpush.bf16.msra.mxu0 0
        %513 = vmatpush.bf16.msra.mxu0 %v490
        %514 = vmatpush.bf16.msra.mxu0 %v477
        %515 = vmatpush.bf16.msra.mxu0 %v453
        %516 = vmatmul.bf16.gmra.mxu0 %v484
        %v517 = vpop.f32.mrf.mxu0
        %v518 = vadd.f32 0.0, %v517
        %v519 = vpop.f32.mrf.mxu0
        %520 = vdwg.mxu0
        %521 = vmatpush.bf16.msra.mxu0 0
        %522 = vmatpush.bf16.msra.mxu0 0
        %523 = vmatpush.bf16.msra.mxu0 0
        %524 = vmatpush.bf16.msra.mxu0 0
        %525 = vmatpush.bf16.msra.mxu0 0
        %526 = vmatpush.bf16.msra.mxu0 %v493
        %527 = vmatpush.bf16.msra.mxu0 %v480
        %528 = vmatpush.bf16.msra.mxu0 %v456
        %529 = vmatmul.bf16.gmra.mxu0 %v484
        %v530 = vpop.f32.mrf.mxu0
        %v531 = vadd.f32 0.0, %v530
        %v532 = vpop.f32.mrf.mxu0
        %533 = vdwg.mxu0
        %v534 = vmul.f32 %v505, %v290
        %v535 = vmul.f32 %v518, %v291
        %v536 = vmul.f32 %v531, %v292
        %v537 = vadd.f32 %v534, %v535
        %vm538 = vcmask 261120
        %v539 = vsel %vm538, %v536, 0.0
        %v540 = vadd.f32 %v537, %v539
        %541 = vadd.xlane.f32.xlu0 %v540
        %v542 = vpop.xlane.xlu0 %541
        %v543 = vmul.f32 %v505, %v505
        %v544 = vmul.f32 %v518, %v518
        %v545 = vmul.f32 %v531, %v531
        %v546 = vmul.f32 %v543, %v290
        %v547 = vmul.f32 %v544, %v291
        %v548 = vmul.f32 %v545, %v292
        %v549 = vadd.f32 %v546, %v547
        %v550 = vsel %vm538, %v548, 0.0
        %v551 = vadd.f32 %v549, %v550
        %552 = vadd.xlane.f32.xlu0 %v551
        %v553 = vpop.xlane.xlu0 %552
        %v554 = vmul.f32 %v542, 0.00390625
        %v555 = vmul.f32 %v553, 0.00390625
        %v556 = vmul.f32 %v554, %v554
        %v557 = vsub.f32 %v555, %v556
        %v558 = vsub.f32 %v505, %v554
        %v559 = vsub.f32 %v518, %v554
        %v560 = vsub.f32 %v531, %v554
        %v561 = vadd.f32 %v557, 1e-05
        %v562 = vrsqrt.pop %v561
        %v563 = vmul.f32 %v562, %v561
        %v564 = vmul.f32 %v563, %v562
        %v565 = vmul.f32 0.5, %v564
        %v566 = vsub.f32 1.5, %v565
        %v567 = vmul.f32 %v562, %v566
        %vm568 = vweird.f32 %v561
        %vm569 = vweird.f32 %v562
        %vm570 = vmor %vm568, %vm569
        %v571 = vsel %vm570, %v562, %v567
        %v572 = vmul.f32 %v558, %v571
        %v573 = vmul.f32 %v559, %v571
        %v574 = vmul.f32 %v560, %v571
        %v575 = vmax.f32 %v572, 0.0
        %v576 = vmax.f32 %v573, 0.0
        %v577 = vmax.f32 %v574, 0.0
        %578 = vst [vmem:[%s176] sm:$0xff] %v575
        %579 = vst [vmem:[%s176 + $0x8] sm:$0xff] %v576
        %580 = vst.msk [vmem:[%s176 + $0x10] sm:$0xff] %vm538, %v577
        %s581 = sand.u32 %s75, 1
        %s582 = scalar_lea.sflag [#allocation4], %s581
        %s583 = sand.u32 %s75, 1
        %s584 = smul.addr %s583, 24
        %s585 = scalar_lea.vmem [#allocation7], %s584
        // Predicated region
        $region37: #{tpu_custom_call.1} parent=27 // pred_check
          %p586 = pneg %p85
        $region38: #{tpu_custom_call.1} parent=27 // pred_check_branch
          %588 = sbr.rel (%p586) target = $region40
        $region39: #{tpu_custom_call.1} parent=27 // pred_region
          %590 = vsyncadd %s582, 0
          %s591 = smul.addr %s20, 3
          %s592 = smul.addr %s591, 8
          %s593 = scalar_lea.hbm %s2, %s592
          %s595 = sshll.u32 %s585, 4
          %s596 = int_to_ptr.vmem [resolvable:$true] %s595
          %s597 = sshll.u32 %s593, 4
          %s598 = int_to_ptr.hbm [resolvable:$true] %s597
          %600 = dma.vmem_to_hbm [thread:$0]  %s596, 384, %s598, %s582
        $region40: #{tpu_custom_call.1} parent=27 // pred_fallthru
          _
      $region28: #{tpu_custom_call.1} parent=5 // pred_fallthru
        _
      %p601 = scmp.le.s32.totalorder 2, %s15
      // Predicated region
      $region41: #{tpu_custom_call.1} parent=5 // pred_check
        %p602 = pneg %p601
      $region42: #{tpu_custom_call.1} parent=5 // pred_check_branch
        %604 = sbr.rel (%p602) target = $region44
      $region43: #{tpu_custom_call.1} parent=5 // pred_region
        %s605 = ssub.s32 %s15, 2
        // Predicated region
        $region45: #{tpu_custom_call.1} parent=43 // pred_check
          %p606 = pneg %p91
        $region46: #{tpu_custom_call.1} parent=43 // pred_check_branch
          %608 = sbr.rel (%p606) target = $region48
        $region47: #{tpu_custom_call.1} parent=43 // pred_region
          %s609 = sand.u32 %s76, 1
          %s610 = scalar_lea.sflag [#allocation4], %s609
          %s611 = sand.u32 %s76, 1
          %s612 = smul.addr %s611, 24
          %s613 = scalar_lea.vmem [#allocation7], %s612
          %615 = dma.done %s610, 384
        $region48: #{tpu_custom_call.1} parent=43 // pred_fallthru
          _
      $region44: #{tpu_custom_call.1} parent=5 // pred_fallthru
        _
    $region6: #{tpu_custom_call.1} parent=1 // loop_footer
      %s19 = sadd.s32 1, %s15
    $region7: #{tpu_custom_call.1} parent=1 // loop_footer_branch
      %14 = sbr.rel target = $region3
    $region8: #{tpu_custom_call.1} parent=1 // loop_exit
      _
    %616 = vsyncpa [#allocation3], 1
    %s617 = scalar_lea.sflag [#allocation3], 1
    %618 = vsyncpa %s617, 1
    %619 = vsyncpa [#allocation6], 1
    %620 = vsyncpa [#allocation4], 1
    %s621 = scalar_lea.sflag [#allocation4], 1
    %622 = vsyncpa %s621, 1

</llo_original>
